<compile_context>
chip_gen: v7x
topology: tpu7x:2x2x1
jax: 0.10.0
libtpu: 0.0.40
codegen_flags: <defaults>
</compile_context>

<pallas_src>
import jax
import jax.numpy as jnp
from jax.experimental import pallas as pl
from jax.experimental.pallas import tpu as pltpu


def _round_up(x, m):
    return ((x + m - 1) // m) * m


def _concept_integration_kernel(concept_ref, exer_bias_ref, w_c_ref, out_ref):
    # concept_ref:   [TR, D]   row tile of flattened (B*K, D) concepts (f32)
    # exer_bias_ref: [TR, D]   precomputed exer @ W_e^T + bias, broadcast per row
    # w_c_ref:       [D, D]    concept half of the Linear weight, [out, in] layout
    # out_ref:       [TR, D]
    c = concept_ref[...]                                        # [TR, D] f32

    # mask = 1 where row-sum of concept != 0 (computed from f32 concept)
    row_sum = jnp.sum(c, axis=-1, keepdims=True)                # [TR, 1]
    mask = (row_sum != 0.0).astype(jnp.float32)                 # [TR, 1]

    # concept @ W_c^T : contract last axes, no transposed weight copy needed.
    y = jax.lax.dot_general(
        c, w_c_ref[...],
        dimension_numbers=(((1,), (1,)), ((), ())),
        preferred_element_type=jnp.float32,
    )                                                           # [TR, D]
    y = y + exer_bias_ref[...]                                  # + (exer@W_e^T + b)
    out_ref[...] = (y * mask).astype(out_ref.dtype)


def exercise_integration(concept, exer, weight, bias, *, row_tile=512):
    """concept: [B, K, D] f32, exer: [B, D] f32, weight: [D, 2D] f32, bias: [D] f32."""
    B, K, D = concept.shape
    assert exer.shape == (B, D)
    assert weight.shape == (D, 2 * D)
    assert bias.shape == (D,)

    # Split the Linear weight into its concept / exercise halves ([out, in]).
    w_c = weight[:, :D]                                   # [D, D]
    w_e = weight[:, D:]                                    # [D, D]

    # Hoisted exercise projection + bias: one small [B, D] x [D, D] matmul in
    # plain JAX, then broadcast over K and flatten to a per-row additive term.
    exer_proj = exer @ w_e.T + bias                        # [B, D]
    exer_bias = jnp.broadcast_to(exer_proj[:, None, :], (B, K, D)).reshape(B * K, D)

    concept_flat = concept.reshape(B * K, D)

    # Row tiling: fuse B and K into one row axis, pad to a multiple of the tile.
    R = B * K
    TR = min(row_tile, _round_up(R, 8))
    R_pad = _round_up(R, TR)
    if R_pad != R:
        pad = R_pad - R
        concept_flat = jnp.pad(concept_flat, ((0, pad), (0, 0)))
        exer_bias = jnp.pad(exer_bias, ((0, pad), (0, 0)))

    grid = (R_pad // TR,)

    cost = pl.CostEstimate(
        flops=2 * R_pad * D * D,
        transcendentals=0,
        bytes_accessed=4 * (3 * R_pad * D + D * D),
    )

    out_flat = pl.pallas_call(
        _concept_integration_kernel,
        out_shape=jax.ShapeDtypeStruct((R_pad, D), jnp.float32),
        grid_spec=pltpu.PrefetchScalarGridSpec(
            num_scalar_prefetch=0,
            grid=grid,
            in_specs=[
                pl.BlockSpec((TR, D), lambda r: (r, 0)),   # concept row tile
                pl.BlockSpec((TR, D), lambda r: (r, 0)),   # exer proj + bias row tile
                pl.BlockSpec((D, D), lambda r: (0, 0)),    # W_c (resident)
            ],
            out_specs=pl.BlockSpec((TR, D), lambda r: (r, 0)),
        ),
        compiler_params=pltpu.CompilerParams(
            dimension_semantics=("parallel",),
            vmem_limit_bytes=48 * 1024 * 1024,
        ),
        cost_estimate=cost,
    )(concept_flat, exer_bias, w_c)

    return out_flat[:R].reshape(B, K, D)


def _reference(concept, exer, weight, bias):
    B, K, D = concept.shape
    exer_ext = jnp.broadcast_to(exer[:, None, :], (B, K, D))
    mask = (jnp.sum(concept, -1, keepdims=True) != 0).astype(jnp.float32)
    x = jnp.concatenate([concept, exer_ext], axis=-1)
    y = x @ weight.T + bias
    return y * mask


if __name__ == "__main__":
    key = jax.random.PRNGKey(0)
    B, K, D = 2, 8, 32   # batch, num concepts per exercise, embed_dim

    k_c, k_e, k_w = jax.random.split(key, 3)
    concept = jax.random.normal(k_c, (B, K, D), dtype=jnp.float32)
    # zero out one concept row so the mask path is exercised
    concept = concept.at[0, 3, :].set(0.0)
    exer = jax.random.normal(k_e, (B, D), dtype=jnp.float32)

    # Deterministic parameter init matching the module's init_weights():
    #   nn.Linear(2D, D): weight [D, 2D] xavier_normal_, bias filled with 0.1
    fan_in, fan_out = 2 * D, D
    xavier_std = (2.0 / (fan_in + fan_out)) ** 0.5
    weight = xavier_std * jax.random.normal(k_w, (D, 2 * D), dtype=jnp.float32)
    bias = jnp.full((D,), 0.1, dtype=jnp.float32)

    out = exercise_integration(concept, exer, weight, bias)
    out = jax.block_until_ready(out)

    ref = _reference(concept, exer, weight, bias)
    assert out.shape == (B, K, D)
    assert jnp.allclose(out, ref, atol=1e-4, rtol=1e-4), "mismatch vs reference"

    print("KERNEL_OK")
</pallas_src>

<mosaic_0001>
module attributes {stable_mosaic.version = 11 : i64} {
  func.func @_concept_integration_kernel(%arg0: i32, %arg1: memref<16x32xf32, #tpu.memory_space<vmem>>, %arg2: memref<16x32xf32, #tpu.memory_space<vmem>>, %arg3: memref<32x32xf32, #tpu.memory_space<vmem>>, %arg4: memref<16x32xf32, #tpu.memory_space<vmem>>) attributes {dimension_semantics = [#tpu.dimension_semantics<parallel>], iteration_bounds = array<i64: 1>, scalar_prefetch = 0 : i64, scratch_operands = 0 : i64, tpu.core_type = #tpu.core_type<tc>, window_params = [{transform_indices = @transform_0, window_bounds = array<i64: 16, 32>}, {transform_indices = @transform_1, window_bounds = array<i64: 16, 32>}, {pipeline_mode = #tpu.pipeline_mode<synchronous>, transform_indices = @transform_2, window_bounds = array<i64: 32, 32>}, {transform_indices = @transform_3, window_bounds = array<i64: 16, 32>}]} {
    %c0 = arith.constant 0 : index
    %c0_0 = arith.constant 0 : index
    %0 = vector.load %arg1[%c0, %c0_0] : memref<16x32xf32, #tpu.memory_space<vmem>>, vector<16x32xf32>
    %cst = arith.constant dense<0.000000e+00> : vector<16xf32>
    %1 = vector.multi_reduction <add>, %0, %cst [1] : vector<16x32xf32> to vector<16xf32>
    %2 = vector.shape_cast %1 : vector<16xf32> to vector<16x1xf32>
    %cst_1 = arith.constant 0.000000e+00 : f32
    %3 = vector.broadcast %cst_1 : f32 to vector<16x1xf32>
    %4 = arith.cmpf one, %2, %3 : vector<16x1xf32>
    %5 = arith.extui %4 : vector<16x1xi1> to vector<16x1xi32>
    %6 = arith.sitofp %5 : vector<16x1xi32> to vector<16x1xf32>
    %c0_2 = arith.constant 0 : index
    %c0_3 = arith.constant 0 : index
    %7 = vector.load %arg3[%c0_2, %c0_3] : memref<32x32xf32, #tpu.memory_space<vmem>>, vector<32x32xf32>
    %cst_4 = arith.constant dense<0.000000e+00> : vector<16x32xf32>
    %8 = tpu.matmul %0, %7, %cst_4 {dimension_numbers = #tpu.dot_dimension_numbers<[1], [1], [0], [0], [0, 0, 1, 0], [], []>} : vector<16x32xf32>, vector<32x32xf32>, vector<16x32xf32> -> vector<16x32xf32>
    %c0_5 = arith.constant 0 : index
    %c0_6 = arith.constant 0 : index
    %9 = vector.load %arg2[%c0_5, %c0_6] : memref<16x32xf32, #tpu.memory_space<vmem>>, vector<16x32xf32>
    %10 = arith.addf %8, %9 : vector<16x32xf32>
    %11 = vector.broadcast %6 : vector<16x1xf32> to vector<16x32xf32>
    %12 = arith.mulf %10, %11 : vector<16x32xf32>
    %c0_7 = arith.constant 0 : index
    %c0_8 = arith.constant 0 : index
    %13 = vector.load %arg4[%c0_7, %c0_8] : memref<16x32xf32, #tpu.memory_space<vmem>>, vector<16x32xf32>
    tpu.vector_store %arg4[%c0_7, %c0_8], %12 {strides = array<i32>} : memref<16x32xf32, #tpu.memory_space<vmem>>, vector<16x32xf32>,
    return
  }
  func.func @transform_0(%arg0: i32) -> (i32, i32) {
    %c0_i32 = arith.constant 0 : i32
    %c0_i32_0 = arith.constant 0 : i32
    return %arg0, %c0_i32 : i32, i32
  }
  func.func @transform_1(%arg0: i32) -> (i32, i32) {
    %c0_i32 = arith.constant 0 : i32
    %c0_i32_0 = arith.constant 0 : i32
    return %arg0, %c0_i32 : i32, i32
  }
  func.func @transform_2(%arg0: i32) -> (i32, i32) {
    %c0_i32 = arith.constant 0 : i32
    %c0_i32_0 = arith.constant 0 : i32
    %c0_i32_1 = arith.constant 0 : i32
    return %c0_i32, %c0_i32_0 : i32, i32
  }
  func.func @transform_3(%arg0: i32) -> (i32, i32) {
    %c0_i32 = arith.constant 0 : i32
    %c0_i32_0 = arith.constant 0 : i32
    return %arg0, %c0_i32 : i32, i32
  }
}

</mosaic_0001>

<llo_original>
// kernel: tpu_custom_call.1
$region0: #{tpu_custom_call.1}
  #allocation0 [shape = 'u32[]', space=smem, size = 0x4, offset = 0x4, fixed_abs, tag = 'smem constant byte address 0x4 - core index']
  #allocation1 [shape = 'u32[144,128]{1,0:T(1,128)}', space=vmem, size = 0x12000, scoped, tag = 'internal scratch']
  %s0 = inlined_call_operand.hbm [shape: f32[16,32], index: 0, kind: input, shape index: {}]
  %s1 = inlined_call_operand.hbm [shape: f32[16,32], index: 1, kind: input, shape index: {}]
  %s2 = inlined_call_operand.hbm [shape: f32[32,32], index: 2, kind: input, shape index: {}]
  %s3 = inlined_call_operand.hbm [shape: f32[16,32], index: 3, kind: output, shape index: {}]
  %s4 = sld [smem:[#allocation0]]
  $region34: #{tpu_custom_call.1} parent=0
    _
  %s6 = ssub.s32 1, %s4
  %s7 = scalar_select 0, %s6, %s4
  $region1: #{tpu_custom_call.1} parent=0
    #allocation2 [shape = 'u8[8192]{0}', space=vmem, size = 0x2000, scoped, tag = 'input window, operand 0, single buffered']
    #allocation3 [shape = 's32[1]{0}', space=sflag, size = 0x4, scoped, tag = 'scoped memory for tpu_custom_call.1']
    #allocation4 [shape = 's32[1]{0}', space=sflag, size = 0x4, scoped, tag = 'scoped memory for tpu_custom_call.1']
    #allocation5 [shape = 'u8[8192]{0}', space=vmem, size = 0x2000, scoped, tag = 'input window, operand 1, single buffered']
    #allocation6 [shape = 's32[1]{0}', space=sflag, size = 0x4, scoped, tag = 'scoped memory for tpu_custom_call.1']
    #allocation7 [shape = 'u8[16384]{0}', space=vmem, size = 0x4000, scoped, tag = 'input window, operand 2, single buffered']
    #allocation8 [shape = 'u8[8192]{0}', space=vmem, size = 0x2000, scoped, tag = 'output window, operand 0, single buffered']
    %8 = vsyncpa [#allocation3], 0
    %9 = vsyncpa [#allocation6], 0
    %10 = vsyncpa [#allocation4], 0
    // Predicated region
    $region2: #{tpu_custom_call.1} parent=1 // pred_check
      _
    $region3: #{tpu_custom_call.1} parent=1 // pred_check_branch
      %12 = sbr.rel (0) target = $region5
    $region4: #{tpu_custom_call.1} parent=1 // pred_region
      %s14 = ssub.s32 256, 256
      %15 = vsyncadd [#allocation3], %s14
      %s16 = sshll.u32 [#allocation2], 4
      %s17 = int_to_ptr.vmem [resolvable:$true] %s16
      %22 = dma.hbm_to_vmem [thread:$0]  %s0, 256, %s17, [#allocation3], 128, 128, 8
    $region5: #{tpu_custom_call.1} parent=1 // pred_fallthru
      _
    // Predicated region
    $region6: #{tpu_custom_call.1} parent=1 // pred_check
      _
    $region7: #{tpu_custom_call.1} parent=1 // pred_check_branch
      %24 = sbr.rel (0) target = $region9
    $region8: #{tpu_custom_call.1} parent=1 // pred_region
      %s26 = ssub.s32 256, 256
      %27 = vsyncadd [#allocation6], %s26
      %s28 = sshll.u32 [#allocation5], 4
      %s29 = int_to_ptr.vmem [resolvable:$true] %s28
      %34 = dma.hbm_to_vmem [thread:$0]  %s1, 256, %s29, [#allocation6], 128, 128, 8
    $region9: #{tpu_custom_call.1} parent=1 // pred_fallthru
      _
    // Predicated region
    $region10: #{tpu_custom_call.1} parent=1 // pred_check
      _
    $region11: #{tpu_custom_call.1} parent=1 // pred_check_branch
      %36 = sbr.rel (0) target = $region13
    $region12: #{tpu_custom_call.1} parent=1 // pred_region
      %s38 = ssub.s32 512, 512
      %39 = vsyncadd [#allocation6], %s38
      %s40 = sshll.u32 [#allocation7], 4
      %s41 = int_to_ptr.vmem [resolvable:$true] %s40
      %46 = dma.hbm_to_vmem [thread:$0]  %s2, 512, %s41, [#allocation6], 128, 128, 8
    $region13: #{tpu_custom_call.1} parent=1 // pred_fallthru
      _
    // Predicated region
    $region14: #{tpu_custom_call.1} parent=1 // pred_check
      _
    $region15: #{tpu_custom_call.1} parent=1 // pred_check_branch
      %48 = sbr.rel (0) target = $region17
    $region16: #{tpu_custom_call.1} parent=1 // pred_region
      %49 = dma.done [#allocation3], 256
    $region17: #{tpu_custom_call.1} parent=1 // pred_fallthru
      _
    // Predicated region
    $region18: #{tpu_custom_call.1} parent=1 // pred_check
      _
    $region19: #{tpu_custom_call.1} parent=1 // pred_check_branch
      %51 = sbr.rel (0) target = $region21
    $region20: #{tpu_custom_call.1} parent=1 // pred_region
      %52 = dma.done [#allocation6], 256
    $region21: #{tpu_custom_call.1} parent=1 // pred_fallthru
      _
    // Predicated region
    $region22: #{tpu_custom_call.1} parent=1 // pred_check
      _
    $region23: #{tpu_custom_call.1} parent=1 // pred_check_branch
      %54 = sbr.rel (0) target = $region25
    $region24: #{tpu_custom_call.1} parent=1 // pred_region
      %55 = dma.done [#allocation6], 512
    $region25: #{tpu_custom_call.1} parent=1 // pred_fallthru
      _
    %v56 = vld [vmem:[#allocation2] sm:$0xff]
    %v57 = vld [vmem:[#allocation2 + $0x8] sm:$0xff]
    %vm58 = vcmask 261120
    %v59 = vsel %vm58, %v56, 0.0
    %60 = vadd.xlane.f32.xlu0 %v59
    %v61 = vpop.xlane.xlu0 %60
    %v62 = vsel %vm58, %v57, 0.0
    %63 = vadd.xlane.f32.xlu0 %v62
    %v64 = vpop.xlane.xlu0 %63
    %vm65 = vcmp.ne.f32.partialorder %v61, 0.0
    %vm66 = vcmp.ne.f32.partialorder %v64, 0.0
    %v67 = vsel %vm65, 1, 0
    %v68 = vsel %vm66, 1, 0
    %v69 = vcvt.s32.f32 %v67
    %v70 = vcvt.s32.f32 %v68
    %v71 = vld [vmem:[#allocation7] sm:$0xff]
    %v72 = vld [vmem:[#allocation7 + $0x8] sm:$0xff]
    %v73 = vld [vmem:[#allocation7 + $0x10] sm:$0xff]
    %v74 = vld [vmem:[#allocation7 + $0x18] sm:$0xff]
    %v75 = vld [vmem:[#allocation5] sm:$0xff]
    %v76 = vld [vmem:[#allocation5 + $0x8] sm:$0xff]
    %v78 = vsel %vm58, %v56, 0
    %v81 = vsel %vm58, %v57, 0
    %v84 = vsel %vm58, %v71, 0
    %v87 = vsel %vm58, %v72, 0
    %v90 = vsel %vm58, %v73, 0
    %v93 = vsel %vm58, %v74, 0
    %95 = vmatprep.subr.mxu0 0.0
    %96 = vmatpush1.xpose.msra.mxu0 %v84
    %97 = vmatprep.subr.mxu0 0.0
    %98 = vmatpush1.xpose.msra.mxu0 %v87
    %99 = vmatprep.subr.mxu0 0.0
    %100 = vmatpush1.xpose.msra.mxu0 %v90
    %101 = vmatprep.subr.mxu0 0.0
    %102 = vmatpush1.xpose.msra.mxu0 %v93
    %103 = vmatprep.subr.mxu0 0.0
    %104 = vmatpush1.xpose.msra.mxu0 0.0
    %105 = vmatprep.subr.mxu0 0.0
    %106 = vmatpush1.xpose.msra.mxu0 0.0
    %107 = vmatprep.subr.mxu0 0.0
    %108 = vmatpush1.xpose.msra.mxu0 0.0
    %109 = vmatprep.subr.mxu0 0.0
    %110 = vmatpush1.xpose.msra.mxu0 0.0
    %111 = vmatprep.subr.mxu0 0.0
    %112 = vmatpush1.xpose.msra.mxu0 0.0
    %113 = vmatprep.subr.mxu0 0.0
    %114 = vmatpush1.xpose.msra.mxu0 0.0
    %115 = vmatprep.subr.mxu0 0.0
    %116 = vmatpush1.xpose.msra.mxu0 0.0
    %117 = vmatprep.subr.mxu0 0.0
    %118 = vmatpush1.xpose.msra.mxu0 0.0
    %119 = vmatprep.subr.mxu0 0.0
    %120 = vmatpush1.xpose.msra.mxu0 0.0
    %121 = vmatprep.subr.mxu0 0.0
    %122 = vmatpush1.xpose.msra.mxu0 0.0
    %123 = vmatprep.subr.mxu0 0.0
    %124 = vmatpush1.xpose.msra.mxu0 0.0
    %125 = vmatprep.subr.mxu0 0.0
    %126 = vmatpush1.xpose.msra.mxu0 0.0
    %127 = vmatprep.subr.mxu0 0.0
    %128 = vmatpush1.xpose.msra.mxu0 0.0
    %129 = vmatprep.subr.mxu0 0.0
    %130 = vmatpush1.xpose.msra.mxu0 0.0
    %131 = vmatprep.subr.mxu0 0.0
    %132 = vmatpush1.xpose.msra.mxu0 0.0
    %133 = vmatprep.subr.mxu0 0.0
    %134 = vmatpush1.xpose.msra.mxu0 0.0
    %135 = vmatprep.subr.mxu0 0.0
    %136 = vmatpush1.xpose.msra.mxu0 0.0
    %137 = vmatprep.subr.mxu0 0.0
    %138 = vmatpush1.xpose.msra.mxu0 0.0
    %139 = vmatprep.subr.mxu0 0.0
    %140 = vmatpush1.xpose.msra.mxu0 0.0
    %141 = vmatprep.subr.mxu0 0.0
    %142 = vmatpush1.xpose.msra.mxu0 0.0
    %143 = vmatprep.subr.mxu0 0.0
    %144 = vmatpush1.xpose.msra.mxu0 0.0
    %145 = vmatprep.subr.mxu0 0.0
    %146 = vmatpush1.xpose.msra.mxu0 0.0
    %147 = vmatprep.subr.mxu0 0.0
    %148 = vmatpush1.xpose.msra.mxu0 0.0
    %149 = vmatprep.subr.mxu0 0.0
    %150 = vmatpush1.xpose.msra.mxu0 0.0
    %151 = vmatprep.subr.mxu0 0.0
    %152 = vmatpush1.xpose.msra.mxu0 0.0
    %153 = vmatprep.subr.mxu0 0.0
    %154 = vmatpush1.xpose.msra.mxu0 0.0
    %155 = vmatprep.subr.mxu0 0.0
    %156 = vmatpush1.xpose.msra.mxu0 0.0
    %157 = vmatprep.subr.mxu0 0.0
    %158 = vmatpush1.xpose.msra.mxu0 0.0
    %159 = vmatprep.mubr.f32.mxu0 0.0
    %160 = vmatmul.mubr.f32.gmra.mrb[0].mxu0 %v78
    %v161 = vpop.f32.mrb[0].mxu0
    %v162 = vadd.f32 %v75, %v161
    %v163 = vpop.f32.mrb[0].mxu0
    %164 = vmatprep.mubr.f32.mxu0 0.0
    %165 = vmatmul.mubr.f32.gmra.mrb[0].mxu0 %v81
    %v166 = vpop.f32.mrb[0].mxu0
    %v167 = vadd.f32 %v76, %v166
    %v168 = vpop.f32.mrb[0].mxu0
    %169 = vdwg.mxu0
    %v170 = vmul.f32 %v162, %v69
    %v171 = vmul.f32 %v167, %v70
    %172 = vst.msk [vmem:[#allocation8] sm:$0xff] %vm58, %v170
    %173 = vst.msk [vmem:[#allocation8 + $0x8] sm:$0xff] %vm58, %v171
    // Predicated region
    $region26: #{tpu_custom_call.1} parent=1 // pred_check
      _
    $region27: #{tpu_custom_call.1} parent=1 // pred_check_branch
      %175 = sbr.rel (0) target = $region29
    $region28: #{tpu_custom_call.1} parent=1 // pred_region
      %s177 = ssub.s32 256, 256
      %178 = vsyncadd [#allocation4], %s177
      %s179 = sshll.u32 [#allocation8], 4
      %s180 = int_to_ptr.vmem [resolvable:$true] %s179
      %185 = dma.vmem_to_hbm [thread:$0]  %s180, 256, %s3, [#allocation4], 128, 128, 8
    $region29: #{tpu_custom_call.1} parent=1 // pred_fallthru
      _
    // Predicated region
    $region30: #{tpu_custom_call.1} parent=1 // pred_check
      _
    $region31: #{tpu_custom_call.1} parent=1 // pred_check_branch
      %187 = sbr.rel (0) target = $region33
    $region32: #{tpu_custom_call.1} parent=1 // pred_region
      %188 = dma.done [#allocation4], 256
    $region33: #{tpu_custom_call.1} parent=1 // pred_fallthru
      _
    %189 = vsyncpa [#allocation3], 1
    %190 = vsyncpa [#allocation6], 1
    %191 = vsyncpa [#allocation4], 1

</llo_original>
